<compile_context>
chip_gen: v7x
topology: tpu7x:2x2x1
jax: 0.10.0
libtpu: 0.0.40
codegen_flags: <defaults>
</compile_context>

<pallas_src>
import functools

import jax
import jax.numpy as jnp
from jax.experimental import pallas as pl
from jax.experimental.pallas import tpu as pltpu


# ----------------------------------------------------------------------------
# helpers / one-time feature detection
# ----------------------------------------------------------------------------
def _round_up(n: int, m: int) -> int:
    return -(-n // m) * m


_BUFFERED_OK = None


def _buffered_supported() -> bool:
    """One-time check whether pipeline_mode=pl.Buffered(1) (single-buffered
    grid-invariant operands) compiles and runs on this JAX/Pallas version."""
    global _BUFFERED_OK
    if _BUFFERED_OK is None:
        try:
            def _k(a_ref, b_ref, o_ref):
                o_ref[...] = a_ref[...] + b_ref[...]

            f = pl.pallas_call(
                _k,
                out_shape=jax.ShapeDtypeStruct((8, 128), jnp.float32),
                grid_spec=pltpu.PrefetchScalarGridSpec(
                    num_scalar_prefetch=0,
                    grid=(1,),
                    in_specs=[
                        pl.BlockSpec((8, 128), lambda i: (0, 0)),
                        pl.BlockSpec((8, 128), lambda i: (0, 0),
                                     pipeline_mode=pl.Buffered(1)),
                    ],
                    out_specs=pl.BlockSpec((8, 128), lambda i: (0, 0)),
                ),
            )
            a = jnp.ones((8, 128), jnp.float32)
            b = jnp.full((8, 128), 2.0, jnp.float32)
            out = jax.block_until_ready(f(a, b))
            _BUFFERED_OK = bool(jnp.allclose(out, a + b))
        except Exception:
            _BUFFERED_OK = False
    return _BUFFERED_OK


_VMEM_CAP = None


def _vmem_capacity_bytes() -> int:
    """Physical per-core VMEM (cached); conservative v7x default on failure."""
    global _VMEM_CAP
    if _VMEM_CAP is None:
        try:
            _VMEM_CAP = int(pltpu.get_tpu_info().vmem_capacity_bytes)
        except Exception:
            _VMEM_CAP = 64 * 1024 * 1024
    return _VMEM_CAP


# ----------------------------------------------------------------------------
# kernel math
# ----------------------------------------------------------------------------
_SQRT_HALF = 0.7071067811865476


def _gelu_layernorm(y, b, g, be, hid_dim, hid_pad):
    """f32 epilogue on one (tm, hid_pad) tile: bias + exact-erf GELU + LayerNorm
    over the *logical* hid_dim lanes (biased variance, eps=1e-6) + affine."""
    y = y + b
    y = 0.5 * y * (1.0 + jax.lax.erf(y * _SQRT_HALF))
    inv_h = 1.0 / float(hid_dim)
    # Padded weight columns / bias lanes are exactly 0 and GELU(0)=0, so padded
    # lanes of y are 0 -> no mask needed before the mean.
    mean = jnp.sum(y, axis=-1, keepdims=True) * inv_h
    diff = y - mean
    if hid_pad != hid_dim:
        lane = jax.lax.broadcasted_iota(jnp.int32, (1, hid_pad), 1)
        diff = jnp.where(lane < hid_dim, diff, 0.0)
    var = jnp.sum(diff * diff, axis=-1, keepdims=True) * inv_h
    y_n = diff * jax.lax.rsqrt(var + 1e-6)
    return y_n * g + be


def _make_resident_kernel(hid_dim, hid_pad, compute_dtype):
    """Weight stays resident in VMEM; grid = (row tiles,)."""
    def kernel(x_ref, w_ref, b_ref, g_ref, be_ref, o_ref):
        y = jnp.dot(x_ref[...].astype(compute_dtype), w_ref[...],
                    preferred_element_type=jnp.float32)
        out = _gelu_layernorm(y, b_ref[...], g_ref[...], be_ref[...],
                              hid_dim, hid_pad)
        o_ref[...] = out.astype(o_ref.dtype)
    return kernel


def _make_ktiled_kernel(hid_dim, hid_pad, compute_dtype):
    """K-tiled weight; grid = (row tiles, K tiles); f32 accumulator scratch."""
    def kernel(x_ref, w_ref, b_ref, g_ref, be_ref, o_ref, acc_ref):
        k = pl.program_id(1)

        @pl.when(k == 0)
        def _():
            acc_ref[...] = jnp.zeros_like(acc_ref)

        acc_ref[...] += jnp.dot(x_ref[...].astype(compute_dtype), w_ref[...],
                                preferred_element_type=jnp.float32)

        @pl.when(k == pl.num_programs(1) - 1)
        def _():
            out = _gelu_layernorm(acc_ref[...], b_ref[...], g_ref[...],
                                  be_ref[...], hid_dim, hid_pad)
            o_ref[...] = out.astype(o_ref.dtype)
    return kernel


# ----------------------------------------------------------------------------
# parameter prep (one-time, hoisted out of the forward hot path)
# ----------------------------------------------------------------------------
def prepare_params(w_r, b_r, gamma, beta, *, compute_dtype=jnp.bfloat16):
    """Pad K and hidden dims to 128-multiples (lane-dense stores / aligned MXU
    contraction), cast the weight to the MXU compute dtype, reshape the 1-D
    params to (1, H_pad). Call once; reuse the result every forward call."""
    in_dim, hid_dim = w_r.shape
    dk_pad = _round_up(in_dim, 128)
    h_pad = _round_up(hid_dim, 128)
    w = jnp.pad(w_r.astype(compute_dtype),
                ((0, dk_pad - in_dim), (0, h_pad - hid_dim)))
    b = jnp.pad(b_r.astype(jnp.float32), (0, h_pad - hid_dim)).reshape(1, h_pad)
    g = jnp.pad(gamma.astype(jnp.float32), (0, h_pad - hid_dim)).reshape(1, h_pad)
    be = jnp.pad(beta.astype(jnp.float32), (0, h_pad - hid_dim)).reshape(1, h_pad)
    return {"w": w, "b": b, "gamma": g, "beta": be,
            "in_dim": in_dim, "hid_dim": hid_dim}


# ----------------------------------------------------------------------------
# forward
# ----------------------------------------------------------------------------
@functools.partial(
    jax.jit,
    static_argnames=("in_dim", "hid_dim", "use_buffered", "vmem_cap", "force_ktile"))
def _mlp_forward_impl(x, w, b, g, be, *, in_dim, hid_dim,
                      use_buffered, vmem_cap, force_ktile=False):
    B, S, D = x.shape
    if D != in_dim:
        raise ValueError(f"x last dim {D} != prepared in_dim {in_dim}")
    dk_pad, h_pad = w.shape
    M = B * S
    compute_dtype = w.dtype
    w_isz = jnp.dtype(w.dtype).itemsize
    x_isz = jnp.dtype(x.dtype).itemsize
    o_isz = x_isz

    # --- generation-aware VMEM budget & tile policy --------------------------
    large_vmem = vmem_cap >= 100 * 1024 * 1024        # v5e/v6e: 128 MiB physical
    vmem_limit = (100 if large_vmem else 48) * 1024 * 1024
    tm_target = 512 if large_vmem else 256

    # Weight may use at most ~40% of the VMEM budget; otherwise K-tile it.
    weight_budget = int(0.4 * vmem_limit)
    w_buffers_resident = 1 if use_buffered else 2
    resident_ok = (w_buffers_resident * dk_pad * h_pad * w_isz <= weight_budget
                   and not force_ktile)
    if resident_ok:
        tk = dk_pad
    else:
        per_block_budget = weight_budget // 2          # K blocks are double-buffered
        q = dk_pad // 128
        tk = 128
        for d in range(1, q + 1):                      # tk must divide dk_pad
            if q % d == 0 and 128 * d * h_pad * w_isz <= per_block_budget:
                tk = 128 * d
        if force_ktile:
            tk = 128 if dk_pad > 128 else dk_pad
    ktiled = tk < dk_pad

    def vmem_estimate(tm_):
        est = 2 * tm_ * tk * x_isz                                  # x tile
        est += (2 if ktiled else w_buffers_resident) * tk * h_pad * w_isz
        est += 2 * tm_ * h_pad * o_isz                              # out tile
        if ktiled:
            est += tm_ * h_pad * 4                                  # accumulator
        est += 3 * (1 if use_buffered else 2) * h_pad * 4           # b/gamma/beta
        return est

    tm = min(tm_target, _round_up(M, 128))
    while tm > 128 and vmem_estimate(tm) > int(0.9 * vmem_limit):
        tm -= 128
    # Keep at least 4 row tiles when there is enough data (feeds both v7x TCs).
    while tm > 128 and _round_up(M, tm) // tm < 4 and tm % 256 == 0:
        tm //= 2
    m_pad = _round_up(M, tm)

    # --- per-call activation prep (activation only; params already prepped) --
    x2d = x.reshape(M, D)
    if m_pad != M or dk_pad != D:
        x2d = jnp.pad(x2d, ((0, m_pad - M), (0, dk_pad - D)))

    cost = pl.CostEstimate(
        flops=2 * m_pad * dk_pad * h_pad,
        transcendentals=m_pad * h_pad,
        bytes_accessed=(m_pad * dk_pad * x_isz + dk_pad * h_pad * w_isz
                        + 3 * h_pad * 4 + m_pad * h_pad * o_isz),
    )

    def inv_spec(shape, index_map):
        # Grid-invariant operands: single-buffer them when supported to halve
        # their VMEM reservation (decided once at import time, not per call).
        if use_buffered:
            return pl.BlockSpec(shape, index_map, pipeline_mode=pl.Buffered(1))
        return pl.BlockSpec(shape, index_map)

    if not ktiled:
        kernel = _make_resident_kernel(hid_dim, h_pad, compute_dtype)
        grid_spec = pltpu.PrefetchScalarGridSpec(
            num_scalar_prefetch=0,
            grid=(m_pad // tm,),
            in_specs=[
                pl.BlockSpec((tm, dk_pad), lambda i: (i, 0)),   # x row tile
                inv_spec((dk_pad, h_pad), lambda i: (0, 0)),    # weight (resident)
                inv_spec((1, h_pad), lambda i: (0, 0)),         # linear bias
                inv_spec((1, h_pad), lambda i: (0, 0)),         # LN gamma
                inv_spec((1, h_pad), lambda i: (0, 0)),         # LN beta
            ],
            out_specs=pl.BlockSpec((tm, h_pad), lambda i: (i, 0)),
        )
        dim_sem = ("parallel",)
    else:
        kernel = _make_ktiled_kernel(hid_dim, h_pad, compute_dtype)
        grid_spec = pltpu.PrefetchScalarGridSpec(
            num_scalar_prefetch=0,
            grid=(m_pad // tm, dk_pad // tk),
            in_specs=[
                pl.BlockSpec((tm, tk), lambda i, k: (i, k)),    # x tile
                pl.BlockSpec((tk, h_pad), lambda i, k: (k, 0)), # weight K block
                inv_spec((1, h_pad), lambda i, k: (0, 0)),
                inv_spec((1, h_pad), lambda i, k: (0, 0)),
                inv_spec((1, h_pad), lambda i, k: (0, 0)),
            ],
            out_specs=pl.BlockSpec((tm, h_pad), lambda i, k: (i, 0)),
            scratch_shapes=[pltpu.VMEM((tm, h_pad), jnp.float32)],
        )
        dim_sem = ("parallel", "arbitrary")

    out2d = pl.pallas_call(
        kernel,
        out_shape=jax.ShapeDtypeStruct((m_pad, h_pad), x.dtype),
        grid_spec=grid_spec,
        compiler_params=pltpu.CompilerParams(
            dimension_semantics=dim_sem,
            vmem_limit_bytes=vmem_limit,
        ),
        cost_estimate=cost,
    )(x2d, w, b, g, be)

    if m_pad != M or h_pad != hid_dim:
        # TODO(synk): when H is already a 128-multiple and the consumer can take
        # padded rows, skip this slice (it is an extra O(M*H) HBM round trip).
        out2d = out2d[:M, :hid_dim]
    return out2d.reshape(B, S, hid_dim)


def mlp_forward(x, params):
    """Eval-mode Mlp forward. x: (B, S, in_dim); params from prepare_params()."""
    return _mlp_forward_impl(
        x, params["w"], params["b"], params["gamma"], params["beta"],
        in_dim=params["in_dim"], hid_dim=params["hid_dim"],
        use_buffered=_buffered_supported(), vmem_cap=_vmem_capacity_bytes())


# ----------------------------------------------------------------------------
# init + reference + test
# ----------------------------------------------------------------------------
def init_params(key, input_dim, hid_dim):
    """Matches the module's _init_weights semantics (eval branch only)."""
    k_w, k_b = jax.random.split(key)
    bound = jnp.sqrt(6.0 / (input_dim + hid_dim))          # xavier_uniform
    w_r = jax.random.uniform(k_w, (input_dim, hid_dim),
                             minval=-bound, maxval=bound, dtype=jnp.float32)
    b_r = 1e-6 * jax.random.normal(k_b, (hid_dim,), dtype=jnp.float32)
    gamma = jnp.ones((hid_dim,), dtype=jnp.float32)        # LayerNorm affine
    beta = jnp.zeros((hid_dim,), dtype=jnp.float32)
    return w_r, b_r, gamma, beta


def _reference(x, w_r, b_r, gamma, beta, compute_dtype=jnp.bfloat16):
    """Pure-JAX reference of the same math (same bf16 operand rounding)."""
    B, S, D = x.shape
    xf = x.reshape(-1, D).astype(compute_dtype).astype(jnp.float32)
    wf = w_r.astype(compute_dtype).astype(jnp.float32)
    y = xf @ wf + b_r
    y = 0.5 * y * (1.0 + jax.lax.erf(y * _SQRT_HALF))
    mu = y.mean(-1, keepdims=True)
    var = ((y - mu) ** 2).mean(-1, keepdims=True)
    y = (y - mu) * jax.lax.rsqrt(var + 1e-6) * gamma + beta
    return y.reshape(B, S, -1)


if __name__ == "__main__":
    key = jax.random.PRNGKey(0)
    k_x1, k_p1, k_x2, k_p2 = jax.random.split(key, 4)

    # Test 1: small shapes consistent with the module; resident-weight path.
    B, S, D_in, H = 2, 8, 16, 32
    x = jax.random.normal(k_x1, (B, S, D_in), dtype=jnp.float32)
    w_r, b_r, gamma, beta = init_params(k_p1, D_in, H)
    params = prepare_params(w_r, b_r, gamma, beta)
    out = jax.block_until_ready(mlp_forward(x, params))
    ref = _reference(x, w_r, b_r, gamma, beta)
    assert out.shape == (B, S, H)
    assert jnp.allclose(out, ref, atol=5e-4, rtol=5e-4), "mismatch (resident path)"

    # Test 2: force the K-tiled accumulator path (2 K steps) + masked hidden pad.
    B2, S2, D2, H2 = 2, 8, 256, 160
    x2 = jax.random.normal(k_x2, (B2, S2, D2), dtype=jnp.float32)
    w2, b2, g2, be2 = init_params(k_p2, D2, H2)
    p2 = prepare_params(w2, b2, g2, be2)
    out2 = _mlp_forward_impl(
        x2, p2["w"], p2["b"], p2["gamma"], p2["beta"],
        in_dim=D2, hid_dim=H2,
        use_buffered=_buffered_supported(), vmem_cap=_vmem_capacity_bytes(),
        force_ktile=True)
    out2 = jax.block_until_ready(out2)
    ref2 = _reference(x2, w2, b2, g2, be2)
    assert out2.shape == (B2, S2, H2)
    assert jnp.allclose(out2, ref2, atol=5e-4, rtol=5e-4), "mismatch (K-tiled path)"

    print("KERNEL_OK")
</pallas_src>

<mosaic_0001>
module attributes {stable_mosaic.version = 11 : i64} {
  func.func @_k(%arg0: i32, %arg1: memref<8x128xf32, #tpu.memory_space<vmem>>, %arg2: memref<8x128xf32, #tpu.memory_space<vmem>>, %arg3: memref<8x128xf32, #tpu.memory_space<vmem>>) attributes {dimension_semantics = [#tpu.dimension_semantics<arbitrary>], iteration_bounds = array<i64: 1>, scalar_prefetch = 0 : i64, scratch_operands = 0 : i64, tpu.core_type = #tpu.core_type<tc>, window_params = [{pipeline_mode = #tpu.pipeline_mode<synchronous>, transform_indices = @transform_0, window_bounds = array<i64: 8, 128>}, {pipeline_mode = #tpu.pipeline_mode<synchronous>, transform_indices = @transform_1, window_bounds = array<i64: 8, 128>}, {pipeline_mode = #tpu.pipeline_mode<synchronous>, transform_indices = @transform_2, window_bounds = array<i64: 8, 128>}]} {
    %c0 = arith.constant 0 : index
    %c0_0 = arith.constant 0 : index
    %0 = vector.load %arg1[%c0, %c0_0] : memref<8x128xf32, #tpu.memory_space<vmem>>, vector<8x128xf32>
    %c0_1 = arith.constant 0 : index
    %c0_2 = arith.constant 0 : index
    %1 = vector.load %arg2[%c0_1, %c0_2] : memref<8x128xf32, #tpu.memory_space<vmem>>, vector<8x128xf32>
    %2 = arith.addf %0, %1 : vector<8x128xf32>
    %c0_3 = arith.constant 0 : index
    %c0_4 = arith.constant 0 : index
    %3 = vector.load %arg3[%c0_3, %c0_4] : memref<8x128xf32, #tpu.memory_space<vmem>>, vector<8x128xf32>
    tpu.vector_store %arg3[%c0_3, %c0_4], %2 {strides = array<i32>} : memref<8x128xf32, #tpu.memory_space<vmem>>, vector<8x128xf32>,
    return
  }
  func.func @transform_0(%arg0: i32) -> (i32, i32) {
    %c0_i32 = arith.constant 0 : i32
    %c0_i32_0 = arith.constant 0 : i32
    %c0_i32_1 = arith.constant 0 : i32
    return %c0_i32, %c0_i32_0 : i32, i32
  }
  func.func @transform_1(%arg0: i32) -> (i32, i32) {
    %c0_i32 = arith.constant 0 : i32
    %c0_i32_0 = arith.constant 0 : i32
    %c0_i32_1 = arith.constant 0 : i32
    return %c0_i32, %c0_i32_0 : i32, i32
  }
  func.func @transform_2(%arg0: i32) -> (i32, i32) {
    %c0_i32 = arith.constant 0 : i32
    %c0_i32_0 = arith.constant 0 : i32
    %c0_i32_1 = arith.constant 0 : i32
    return %c0_i32, %c0_i32_0 : i32, i32
  }
}

module attributes {stable_mosaic.version = 11 : i64} {
  func.func @kernel(%arg0: i32, %arg1: memref<128x128xf32, #tpu.memory_space<vmem>>, %arg2: memref<128x128xbf16, #tpu.memory_space<vmem>>, %arg3: memref<1x128xf32, #tpu.memory_space<vmem>>, %arg4: memref<1x128xf32, #tpu.memory_space<vmem>>, %arg5: memref<1x128xf32, #tpu.memory_space<vmem>>, %arg6: memref<128x128xf32, #tpu.memory_space<vmem>>) attributes {dimension_semantics = [#tpu.dimension_semantics<parallel>], iteration_bounds = array<i64: 1>, scalar_prefetch = 0 : i64, scratch_operands = 0 : i64, tpu.core_type = #tpu.core_type<tc>, window_params = [{transform_indices = @transform_0, window_bounds = array<i64: 128, 128>}, {pipeline_mode = #tpu.pipeline_mode<synchronous>, transform_indices = @transform_1, window_bounds = array<i64: 128, 128>}, {pipeline_mode = #tpu.pipeline_mode<synchronous>, transform_indices = @transform_2, window_bounds = array<i64: 1, 128>}, {pipeline_mode = #tpu.pipeline_mode<synchronous>, transform_indices = @transform_3, window_bounds = array<i64: 1, 128>}, {pipeline_mode = #tpu.pipeline_mode<synchronous>, transform_indices = @transform_4, window_bounds = array<i64: 1, 128>}, {transform_indices = @transform_5, window_bounds = array<i64: 128, 128>}]} {
    %c0 = arith.constant 0 : index
    %c0_0 = arith.constant 0 : index
    %0 = vector.load %arg1[%c0, %c0_0] : memref<128x128xf32, #tpu.memory_space<vmem>>, vector<128x128xf32>
    %1 = arith.truncf %0 : vector<128x128xf32> to vector<128x128xbf16>
    %c0_1 = arith.constant 0 : index
    %c0_2 = arith.constant 0 : index
    %2 = vector.load %arg2[%c0_1, %c0_2] : memref<128x128xbf16, #tpu.memory_space<vmem>>, vector<128x128xbf16>
    %cst = arith.constant dense<0.000000e+00> : vector<128x128xf32>
    %3 = tpu.matmul %1, %2, %cst {dimension_numbers = #tpu.dot_dimension_numbers<[1], [0], [0], [1], [0, 0, 1, 1], [], []>} : vector<128x128xbf16>, vector<128x128xbf16>, vector<128x128xf32> -> vector<128x128xf32>
    %c0_3 = arith.constant 0 : index
    %c0_4 = arith.constant 0 : index
    %4 = vector.load %arg3[%c0_3, %c0_4] : memref<1x128xf32, #tpu.memory_space<vmem>>, vector<1x128xf32>
    %c0_5 = arith.constant 0 : index
    %c0_6 = arith.constant 0 : index
    %5 = vector.load %arg4[%c0_5, %c0_6] : memref<1x128xf32, #tpu.memory_space<vmem>>, vector<1x128xf32>
    %c0_7 = arith.constant 0 : index
    %c0_8 = arith.constant 0 : index
    %6 = vector.load %arg5[%c0_7, %c0_8] : memref<1x128xf32, #tpu.memory_space<vmem>>, vector<1x128xf32>
    %7 = vector.broadcast %4 : vector<1x128xf32> to vector<128x128xf32>
    %8 = arith.addf %3, %7 : vector<128x128xf32>
    %cst_9 = arith.constant 5.000000e-01 : f32
    %9 = vector.broadcast %cst_9 : f32 to vector<128x128xf32>
    %10 = arith.mulf %9, %8 : vector<128x128xf32>
    %cst_10 = arith.constant 0.707106769 : f32
    %11 = vector.broadcast %cst_10 : f32 to vector<128x128xf32>
    %12 = arith.mulf %8, %11 : vector<128x128xf32>
    %13 = math.erf %12 : vector<128x128xf32>
    %cst_11 = arith.constant 1.000000e+00 : f32
    %14 = vector.broadcast %cst_11 : f32 to vector<128x128xf32>
    %15 = arith.addf %14, %13 : vector<128x128xf32>
    %16 = arith.mulf %10, %15 : vector<128x128xf32>
    %cst_12 = arith.constant dense<0.000000e+00> : vector<128xf32>
    %17 = vector.multi_reduction <add>, %16, %cst_12 [1] : vector<128x128xf32> to vector<128xf32>
    %18 = vector.shape_cast %17 : vector<128xf32> to vector<128x1xf32>
    %cst_13 = arith.constant 3.125000e-02 : f32
    %19 = vector.broadcast %cst_13 : f32 to vector<128x1xf32>
    %20 = arith.mulf %18, %19 : vector<128x1xf32>
    %21 = vector.broadcast %20 : vector<128x1xf32> to vector<128x128xf32>
    %22 = arith.subf %16, %21 : vector<128x128xf32>
    %23 = tpu.iota {dimensions = array<i32: 1>} : vector<1x128xi32>
    %c32_i32 = arith.constant 32 : i32
    %24 = vector.broadcast %c32_i32 : i32 to vector<1x128xi32>
    %25 = arith.cmpi slt, %23, %24 : vector<1x128xi32>
    %cst_14 = arith.constant 0.000000e+00 : f32
    %26 = vector.shape_cast %25 : vector<1x128xi1> to vector<1x128xi1>
    %27 = vector.broadcast %26 : vector<1x128xi1> to vector<128x128xi1>
    %28 = vector.broadcast %cst_14 : f32 to vector<128x128xf32>
    %29 = arith.select %27, %22, %28 : vector<128x128xi1>, vector<128x128xf32>
    %30 = arith.mulf %29, %29 : vector<128x128xf32>
    %cst_15 = arith.constant dense<0.000000e+00> : vector<128xf32>
    %31 = vector.multi_reduction <add>, %30, %cst_15 [1] : vector<128x128xf32> to vector<128xf32>
    %32 = vector.shape_cast %31 : vector<128xf32> to vector<128x1xf32>
    %cst_16 = arith.constant 3.125000e-02 : f32
    %33 = vector.broadcast %cst_16 : f32 to vector<128x1xf32>
    %34 = arith.mulf %32, %33 : vector<128x1xf32>
    %cst_17 = arith.constant 9.99999997E-7 : f32
    %35 = vector.broadcast %cst_17 : f32 to vector<128x1xf32>
    %36 = arith.addf %34, %35 : vector<128x1xf32>
    %37 = math.rsqrt %36 : vector<128x1xf32>
    %38 = vector.broadcast %37 : vector<128x1xf32> to vector<128x128xf32>
    %39 = arith.mulf %29, %38 : vector<128x128xf32>
    %40 = vector.broadcast %5 : vector<1x128xf32> to vector<128x128xf32>
    %41 = arith.mulf %39, %40 : vector<128x128xf32>
    %42 = vector.broadcast %6 : vector<1x128xf32> to vector<128x128xf32>
    %43 = arith.addf %41, %42 : vector<128x128xf32>
    %c0_18 = arith.constant 0 : index
    %c0_19 = arith.constant 0 : index
    %44 = vector.load %arg6[%c0_18, %c0_19] : memref<128x128xf32, #tpu.memory_space<vmem>>, vector<128x128xf32>
    tpu.vector_store %arg6[%c0_18, %c0_19], %43 {strides = array<i32>} : memref<128x128xf32, #tpu.memory_space<vmem>>, vector<128x128xf32>,
    return
  }
  func.func @transform_0(%arg0: i32) -> (i32, i32) {
    %c0_i32 = arith.constant 0 : i32
    %c0_i32_0 = arith.constant 0 : i32
    return %arg0, %c0_i32 : i32, i32
  }
  func.func @transform_1(%arg0: i32) -> (i32, i32) {
    %c0_i32 = arith.constant 0 : i32
    %c0_i32_0 = arith.constant 0 : i32
    %c0_i32_1 = arith.constant 0 : i32
    return %c0_i32, %c0_i32_0 : i32, i32
  }
  func.func @transform_2(%arg0: i32) -> (i32, i32) {
    %c0_i32 = arith.constant 0 : i32
    %c0_i32_0 = arith.constant 0 : i32
    %c0_i32_1 = arith.constant 0 : i32
    return %c0_i32, %c0_i32_0 : i32, i32
  }
  func.func @transform_3(%arg0: i32) -> (i32, i32) {
    %c0_i32 = arith.constant 0 : i32
    %c0_i32_0 = arith.constant 0 : i32
    %c0_i32_1 = arith.constant 0 : i32
    return %c0_i32, %c0_i32_0 : i32, i32
  }
  func.func @transform_4(%arg0: i32) -> (i32, i32) {
    %c0_i32 = arith.constant 0 : i32
    %c0_i32_0 = arith.constant 0 : i32
    %c0_i32_1 = arith.constant 0 : i32
    return %c0_i32, %c0_i32_0 : i32, i32
  }
  func.func @transform_5(%arg0: i32) -> (i32, i32) {
    %c0_i32 = arith.constant 0 : i32
    %c0_i32_0 = arith.constant 0 : i32
    return %arg0, %c0_i32 : i32, i32
  }
}

</mosaic_0001>

<llo_original>
// kernel: tpu_custom_call.1
$region0: #{tpu_custom_call.1}
  #allocation0 [shape = 'u32[]', space=smem, size = 0x4, offset = 0x4, fixed_abs, tag = 'smem constant byte address 0x4 - core index']
  #allocation1 [shape = 'u32[144,128]{1,0:T(1,128)}', space=vmem, size = 0x12000, scoped, tag = 'internal scratch']
  %s0 = inlined_call_operand.hbm [shape: f32[8,128], index: 0, kind: input, shape index: {}]
  %s1 = inlined_call_operand.hbm [shape: f32[8,128], index: 1, kind: input, shape index: {}]
  %s2 = inlined_call_operand.hbm [shape: f32[8,128], index: 2, kind: output, shape index: {}]
  %s3 = sld [smem:[#allocation0]]
  $region26: #{tpu_custom_call.1} parent=0
    _
  %s5 = ssub.s32 1, %s3
  %s6 = scalar_select 0, %s5, %s3
  $region1: #{tpu_custom_call.1} parent=0
    #allocation2 [shape = 'u8[4096]{0}', space=vmem, size = 0x1000, scoped, tag = 'input window, operand 0, single buffered']
    #allocation3 [shape = 's32[1]{0}', space=sflag, size = 0x4, scoped, tag = 'scoped memory for tpu_custom_call.1']
    #allocation4 [shape = 's32[1]{0}', space=sflag, size = 0x4, scoped, tag = 'scoped memory for tpu_custom_call.1']
    #allocation5 [shape = 'u8[4096]{0}', space=vmem, size = 0x1000, scoped, tag = 'input window, operand 1, single buffered']
    #allocation6 [shape = 's32[1]{0}', space=sflag, size = 0x4, scoped, tag = 'scoped memory for tpu_custom_call.1']
    #allocation7 [shape = 'u8[4096]{0}', space=vmem, size = 0x1000, scoped, tag = 'output window, operand 0, single buffered']
    %7 = vsyncpa [#allocation3], 0
    %8 = vsyncpa [#allocation6], 0
    %9 = vsyncpa [#allocation4], 0
    // Predicated region
    $region2: #{tpu_custom_call.1} parent=1 // pred_check
      _
    $region3: #{tpu_custom_call.1} parent=1 // pred_check_branch
      %11 = sbr.rel (0) target = $region5
    $region4: #{tpu_custom_call.1} parent=1 // pred_region
      %s13 = ssub.s32 128, 128
      %14 = vsyncadd [#allocation3], %s13
      %s16 = sshll.u32 [#allocation2], 4
      %s17 = int_to_ptr.vmem [resolvable:$true] %s16
      %19 = dma.hbm_to_vmem [thread:$0]  %s0, 128, %s17, [#allocation3]
    $region5: #{tpu_custom_call.1} parent=1 // pred_fallthru
      _
    // Predicated region
    $region6: #{tpu_custom_call.1} parent=1 // pred_check
      _
    $region7: #{tpu_custom_call.1} parent=1 // pred_check_branch
      %21 = sbr.rel (0) target = $region9
    $region8: #{tpu_custom_call.1} parent=1 // pred_region
      %s23 = ssub.s32 128, 128
      %24 = vsyncadd [#allocation6], %s23
      %s26 = sshll.u32 [#allocation5], 4
      %s27 = int_to_ptr.vmem [resolvable:$true] %s26
      %29 = dma.hbm_to_vmem [thread:$0]  %s1, 128, %s27, [#allocation6]
    $region9: #{tpu_custom_call.1} parent=1 // pred_fallthru
      _
    // Predicated region
    $region10: #{tpu_custom_call.1} parent=1 // pred_check
      _
    $region11: #{tpu_custom_call.1} parent=1 // pred_check_branch
      %31 = sbr.rel (0) target = $region13
    $region12: #{tpu_custom_call.1} parent=1 // pred_region
      %32 = dma.done [#allocation3], 128
    $region13: #{tpu_custom_call.1} parent=1 // pred_fallthru
      _
    // Predicated region
    $region14: #{tpu_custom_call.1} parent=1 // pred_check
      _
    $region15: #{tpu_custom_call.1} parent=1 // pred_check_branch
      %34 = sbr.rel (0) target = $region17
    $region16: #{tpu_custom_call.1} parent=1 // pred_region
      %35 = dma.done [#allocation6], 128
    $region17: #{tpu_custom_call.1} parent=1 // pred_fallthru
      _
    %v36 = vld [vmem:[#allocation2] sm:$0xff]
    %v37 = vld [vmem:[#allocation5] sm:$0xff]
    %v38 = vadd.f32 %v36, %v37
    %39 = vst [vmem:[#allocation7] sm:$0xff] %v38
    // Predicated region
    $region18: #{tpu_custom_call.1} parent=1 // pred_check
      _
    $region19: #{tpu_custom_call.1} parent=1 // pred_check_branch
      %41 = sbr.rel (0) target = $region21
    $region20: #{tpu_custom_call.1} parent=1 // pred_region
      %s43 = ssub.s32 128, 128
      %44 = vsyncadd [#allocation4], %s43
      %s46 = sshll.u32 [#allocation7], 4
      %s47 = int_to_ptr.vmem [resolvable:$true] %s46
      %49 = dma.vmem_to_hbm [thread:$0]  %s47, 128, %s2, [#allocation4]
    $region21: #{tpu_custom_call.1} parent=1 // pred_fallthru
      _
    // Predicated region
    $region22: #{tpu_custom_call.1} parent=1 // pred_check
      _
    $region23: #{tpu_custom_call.1} parent=1 // pred_check_branch
      %51 = sbr.rel (0) target = $region25
    $region24: #{tpu_custom_call.1} parent=1 // pred_region
      %52 = dma.done [#allocation4], 128
    $region25: #{tpu_custom_call.1} parent=1 // pred_fallthru
      _
    %53 = vsyncpa [#allocation3], 1
    %54 = vsyncpa [#allocation6], 1
    %55 = vsyncpa [#allocation4], 1

// kernel: _mlp_forward_impl.1
$region0: #{_mlp_forward_impl.1}
  #allocation0 [shape = 'u32[]', space=smem, size = 0x4, offset = 0x4, fixed_abs, tag = 'smem constant byte address 0x4 - core index']
  #allocation1 [shape = 'u32[144,128]{1,0:T(1,128)}', space=vmem, size = 0x12000, scoped, tag = 'internal scratch']
  %s0 = inlined_call_operand.vmem [shape: f32[128,128], index: 0, kind: input, shape index: {}]
  %s1 = inlined_call_operand.vmem [shape: bf16[128,128], index: 1, kind: input, shape index: {}]
  %s2 = inlined_call_operand.vmem [shape: f32[1,128], index: 2, kind: input, shape index: {}]
  %s3 = inlined_call_operand.vmem [shape: f32[1,128], index: 3, kind: input, shape index: {}]
  %s4 = inlined_call_operand.vmem [shape: f32[1,128], index: 4, kind: input, shape index: {}]
  %s5 = inlined_call_operand.vmem [shape: f32[128,128], index: 5, kind: output, shape index: {}]
  %s6 = sld [smem:[#allocation0]]
  $region30: #{_mlp_forward_impl.1} parent=0
    _
  %s8 = ssub.s32 1, %s6
  %s9 = scalar_select 0, %s8, %s6
  // Predicated region
  $region2: #{_mlp_forward_impl.1} parent=0 // pred_check
    _
  $region3: #{_mlp_forward_impl.1} parent=0 // pred_check_branch
    %11 = sbr.rel (0) target = $region5
  $region4: #{_mlp_forward_impl.1} parent=0 // pred_region
    _
  $region5: #{_mlp_forward_impl.1} parent=0 // pred_fallthru
    _
  // Predicated region
  $region6: #{_mlp_forward_impl.1} parent=0 // pred_check
    _
  $region7: #{_mlp_forward_impl.1} parent=0 // pred_check_branch
    %13 = sbr.rel (0) target = $region9
  $region8: #{_mlp_forward_impl.1} parent=0 // pred_region
    _
  $region9: #{_mlp_forward_impl.1} parent=0 // pred_fallthru
    _
  // Predicated region
  $region10: #{_mlp_forward_impl.1} parent=0 // pred_check
    _
  $region11: #{_mlp_forward_impl.1} parent=0 // pred_check_branch
    %15 = sbr.rel (0) target = $region13
  $region12: #{_mlp_forward_impl.1} parent=0 // pred_region
    _
  $region13: #{_mlp_forward_impl.1} parent=0 // pred_fallthru
    _
  // Predicated region
  $region14: #{_mlp_forward_impl.1} parent=0 // pred_check
    _
  $region15: #{_mlp_forward_impl.1} parent=0 // pred_check_branch
    %17 = sbr.rel (0) target = $region17
  $region16: #{_mlp_forward_impl.1} parent=0 // pred_region
    _
  $region17: #{_mlp_forward_impl.1} parent=0 // pred_fallthru
    _
  // Predicated region
  $region18: #{_mlp_forward_impl.1} parent=0 // pred_check
    _
  $region19: #{_mlp_forward_impl.1} parent=0 // pred_check_branch
    %19 = sbr.rel (0) target = $region21
  $region20: #{_mlp_forward_impl.1} parent=0 // pred_region
    _
  $region21: #{_mlp_forward_impl.1} parent=0 // pred_fallthru
    _
  %v21 = vld [vmem:[%s0] sm:$0xff]
  %v22 = vld [vmem:[%s0 + $0x8] sm:$0xff]
  %v23 = vld [vmem:[%s0 + $0x10] sm:$0xff]
  %v24 = vld [vmem:[%s0 + $0x18] sm:$0xff]
  %v25 = vld [vmem:[%s0 + $0x20] sm:$0xff]
  %v26 = vld [vmem:[%s0 + $0x28] sm:$0xff]
  %v27 = vld [vmem:[%s0 + $0x30] sm:$0xff]
  %v28 = vld [vmem:[%s0 + $0x38] sm:$0xff]
  %v29 = vld [vmem:[%s0 + $0x40] sm:$0xff]
  %v30 = vld [vmem:[%s0 + $0x48] sm:$0xff]
  %v31 = vld [vmem:[%s0 + $0x50] sm:$0xff]
  %v32 = vld [vmem:[%s0 + $0x58] sm:$0xff]
  %v33 = vld [vmem:[%s0 + $0x60] sm:$0xff]
  %v34 = vld [vmem:[%s0 + $0x68] sm:$0xff]
  %v35 = vld [vmem:[%s0 + $0x70] sm:$0xff]
  %v36 = vld [vmem:[%s0 + $0x78] sm:$0xff]
  %v37 = vpack.c.bf16 %v22, %v21
  %v38 = vpack.c.bf16 %v24, %v23
  %v39 = vpack.c.bf16 %v26, %v25
  %v40 = vpack.c.bf16 %v28, %v27
  %v41 = vpack.c.bf16 %v30, %v29
  %v42 = vpack.c.bf16 %v32, %v31
  %v43 = vpack.c.bf16 %v34, %v33
  %v44 = vpack.c.bf16 %v36, %v35
  %v45 = vld [vmem:[%s1] sm:$0xf]
  %v46 = vld [vmem:[%s1 + $0x4] sm:$0xf]
  %v47 = vld [vmem:[%s1 + $0x8] sm:$0xf]
  %v48 = vld [vmem:[%s1 + $0xc] sm:$0xf]
  %v49 = vld [vmem:[%s1 + $0x10] sm:$0xf]
  %v50 = vld [vmem:[%s1 + $0x14] sm:$0xf]
  %v51 = vld [vmem:[%s1 + $0x18] sm:$0xf]
  %v52 = vld [vmem:[%s1 + $0x1c] sm:$0xf]
  %v53 = vld [vmem:[%s1 + $0x20] sm:$0xf]
  %v54 = vld [vmem:[%s1 + $0x24] sm:$0xf]
  %v55 = vld [vmem:[%s1 + $0x28] sm:$0xf]
  %v56 = vld [vmem:[%s1 + $0x2c] sm:$0xf]
  %v57 = vld [vmem:[%s1 + $0x30] sm:$0xf]
  %v58 = vld [vmem:[%s1 + $0x34] sm:$0xf]
  %v59 = vld [vmem:[%s1 + $0x38] sm:$0xf]
  %v60 = vld [vmem:[%s1 + $0x3c] sm:$0xf]
  %v61 = vld [vmem:[%s2] sm:$0x1]
  %v62 = vld [vmem:[%s3] sm:$0x1]
  %v63 = vld [vmem:[%s4] sm:$0x1]
  %v65 = vlaneseq
  %v66 = vshrl.u32 %v65, 7
  %v67 = vsub.s32 0, %v66
  %v68 = vrot.slane %v61, %v67
  %v86 = vunpack.c.l.b16 %v45
  %v87 = vunpack.c.l.b16 %v46
  %v88 = vunpack.c.l.b16 %v47
  %v89 = vunpack.c.l.b16 %v48
  %v90 = vunpack.c.l.b16 %v49
  %v91 = vunpack.c.l.b16 %v50
  %v92 = vunpack.c.l.b16 %v51
  %v93 = vunpack.c.l.b16 %v52
  %v94 = vunpack.c.l.b16 %v53
  %v95 = vunpack.c.l.b16 %v54
  %v96 = vunpack.c.l.b16 %v55
  %v97 = vunpack.c.l.b16 %v56
  %v98 = vunpack.c.l.b16 %v57
  %v99 = vunpack.c.l.b16 %v58
  %v100 = vunpack.c.l.b16 %v59
  %v101 = vunpack.c.l.b16 %v60
  %v102 = vpack.c.b16 %v87, %v86
  %v103 = vpack.c.b16 %v89, %v88
  %v104 = vpack.c.b16 %v91, %v90
  %v105 = vpack.c.b16 %v93, %v92
  %v106 = vpack.c.b16 %v95, %v94
  %v107 = vpack.c.b16 %v97, %v96
  %v108 = vpack.c.b16 %v99, %v98
  %v109 = vpack.c.b16 %v101, %v100
  %118 = vmatprep.subr.bf16.mxu0 0
  %119 = vmatpush1.bf16.msra.mxu0 %v102
  %120 = vmatprep.subr.bf16.mxu0 0
  %121 = vmatpush1.bf16.msra.mxu0 %v103
  %122 = vmatprep.subr.bf16.mxu0 0
  %123 = vmatpush1.bf16.msra.mxu0 %v104
  %124 = vmatprep.subr.bf16.mxu0 0
  %125 = vmatpush1.bf16.msra.mxu0 %v105
  %126 = vmatprep.subr.bf16.mxu0 0
  %127 = vmatpush1.bf16.msra.mxu0 %v106
  %128 = vmatprep.subr.bf16.mxu0 0
  %129 = vmatpush1.bf16.msra.mxu0 %v107
  %130 = vmatprep.subr.bf16.mxu0 0
  %131 = vmatpush1.bf16.msra.mxu0 %v108
  %132 = vmatprep.subr.bf16.mxu0 0
  %133 = vmatpush1.bf16.msra.mxu0 %v109
  %134 = vmatprep.subr.bf16.mxu0 0
  %135 = vmatpush1.bf16.msra.mxu0 0
  %136 = vmatprep.subr.bf16.mxu0 0
  %137 = vmatpush1.bf16.msra.mxu0 0
  %138 = vmatprep.subr.bf16.mxu0 0
  %139 = vmatpush1.bf16.msra.mxu0 0
  %140 = vmatprep.subr.bf16.mxu0 0
  %141 = vmatpush1.bf16.msra.mxu0 0
  %142 = vmatprep.subr.bf16.mxu0 0
  %143 = vmatpush1.bf16.msra.mxu0 0
  %144 = vmatprep.subr.bf16.mxu0 0
  %145 = vmatpush1.bf16.msra.mxu0 0
  %146 = vmatprep.subr.bf16.mxu0 0
  %147 = vmatpush1.bf16.msra.mxu0 0
  %148 = vmatprep.subr.bf16.mxu0 0
  %149 = vmatpush1.bf16.msra.mxu0 0
  %150 = vmatprep.mubr.bf16.mxu0 0
  %151 = vmatmul.mubr.bf16.gmra.mrb[0].mxu0 %v37
  %v152 = vpop.f32.mrb[0].mxu0
  %v153 = vadd.f32 %v68, %v152
  %v154 = vpop.f32.mrb[0].mxu0
  %v155 = vpop.f32.mrb[0].mxu0
  %v156 = vadd.f32 %v68, %v155
  %v157 = vpop.f32.mrb[0].mxu0
  %158 = vmatprep.mubr.bf16.mxu0 0
  %159 = vmatmul.mubr.bf16.gmra.mrb[0].mxu0 %v38
  %v160 = vpop.f32.mrb[0].mxu0
  %v161 = vadd.f32 %v68, %v160
  %v162 = vpop.f32.mrb[0].mxu0
  %v163 = vpop.f32.mrb[0].mxu0
  %v164 = vadd.f32 %v68, %v163
  %v165 = vpop.f32.mrb[0].mxu0
  %166 = vmatprep.mubr.bf16.mxu0 0
  %167 = vmatmul.mubr.bf16.gmra.mrb[0].mxu0 %v39
  %v168 = vpop.f32.mrb[0].mxu0
  %v169 = vadd.f32 %v68, %v168
  %v170 = vpop.f32.mrb[0].mxu0
  %v171 = vpop.f32.mrb[0].mxu0
  %v172 = vadd.f32 %v68, %v171
  %v173 = vpop.f32.mrb[0].mxu0
  %174 = vmatprep.mubr.bf16.mxu0 0
  %175 = vmatmul.mubr.bf16.gmra.mrb[0].mxu0 %v40
  %v176 = vpop.f32.mrb[0].mxu0
  %v177 = vadd.f32 %v68, %v176
  %v178 = vpop.f32.mrb[0].mxu0
  %v179 = vpop.f32.mrb[0].mxu0
  %v180 = vadd.f32 %v68, %v179
  %v181 = vpop.f32.mrb[0].mxu0
  %182 = vmatprep.mubr.bf16.mxu0 0
  %183 = vmatmul.mubr.bf16.gmra.mrb[0].mxu0 %v41
  %v184 = vpop.f32.mrb[0].mxu0
  %v185 = vadd.f32 %v68, %v184
  %v186 = vpop.f32.mrb[0].mxu0
  %v187 = vpop.f32.mrb[0].mxu0
  %v188 = vadd.f32 %v68, %v187
  %v189 = vpop.f32.mrb[0].mxu0
  %190 = vmatprep.mubr.bf16.mxu0 0
  %191 = vmatmul.mubr.bf16.gmra.mrb[0].mxu0 %v42
  %v192 = vpop.f32.mrb[0].mxu0
  %v193 = vadd.f32 %v68, %v192
  %v194 = vpop.f32.mrb[0].mxu0
  %v195 = vpop.f32.mrb[0].mxu0
  %v196 = vadd.f32 %v68, %v195
  %v197 = vpop.f32.mrb[0].mxu0
  %198 = vmatprep.mubr.bf16.mxu0 0
  %199 = vmatmul.mubr.bf16.gmra.mrb[0].mxu0 %v43
  %v200 = vpop.f32.mrb[0].mxu0
  %v201 = vadd.f32 %v68, %v200
  %v202 = vpop.f32.mrb[0].mxu0
  %v203 = vpop.f32.mrb[0].mxu0
  %v204 = vadd.f32 %v68, %v203
  %v205 = vpop.f32.mrb[0].mxu0
  %206 = vmatprep.mubr.bf16.mxu0 0
  %207 = vmatmul.mubr.bf16.gmra.mrb[0].mxu0 %v44
  %v208 = vpop.f32.mrb[0].mxu0
  %v209 = vadd.f32 %v68, %v208
  %v210 = vpop.f32.mrb[0].mxu0
  %v211 = vpop.f32.mrb[0].mxu0
  %v212 = vadd.f32 %v68, %v211
  %v213 = vpop.f32.mrb[0].mxu0
  %214 = vdwg.mxu0
  %v215 = vmul.f32 %v153, 0.5
  %v216 = vmul.f32 %v156, 0.5
  %v217 = vmul.f32 %v161, 0.5
  %v218 = vmul.f32 %v164, 0.5
  %v219 = vmul.f32 %v169, 0.5
  %v220 = vmul.f32 %v172, 0.5
  %v221 = vmul.f32 %v177, 0.5
  %v222 = vmul.f32 %v180, 0.5
  %v223 = vmul.f32 %v185, 0.5
  %v224 = vmul.f32 %v188, 0.5
  %v225 = vmul.f32 %v193, 0.5
  %v226 = vmul.f32 %v196, 0.5
  %v227 = vmul.f32 %v201, 0.5
  %v228 = vmul.f32 %v204, 0.5
  %v229 = vmul.f32 %v209, 0.5
  %v230 = vmul.f32 %v212, 0.5
  %v231 = vmul.f32 %v153, 0.70710677
  %v232 = vmul.f32 %v156, 0.70710677
  %v233 = vmul.f32 %v161, 0.70710677
  %v234 = vmul.f32 %v164, 0.70710677
  %v235 = vmul.f32 %v169, 0.70710677
  %v236 = vmul.f32 %v172, 0.70710677
  %v237 = vmul.f32 %v177, 0.70710677
  %v238 = vmul.f32 %v180, 0.70710677
  %v239 = vmul.f32 %v185, 0.70710677
  %v240 = vmul.f32 %v188, 0.70710677
  %v241 = vmul.f32 %v193, 0.70710677
  %v242 = vmul.f32 %v196, 0.70710677
  %v243 = vmul.f32 %v201, 0.70710677
  %v244 = vmul.f32 %v204, 0.70710677
  %v245 = vmul.f32 %v209, 0.70710677
  %v246 = vmul.f32 %v212, 0.70710677
  %v247 = verf.f32.pop %v231
  %v248 = verf.f32.pop %v232
  %v249 = verf.f32.pop %v233
  %v250 = verf.f32.pop %v234
  %v251 = verf.f32.pop %v235
  %v252 = verf.f32.pop %v236
  %v253 = verf.f32.pop %v237
  %v254 = verf.f32.pop %v238
  %v255 = verf.f32.pop %v239
  %v256 = verf.f32.pop %v240
  %v257 = verf.f32.pop %v241
  %v258 = verf.f32.pop %v242
  %v259 = verf.f32.pop %v243
  %v260 = verf.f32.pop %v244
  %v261 = verf.f32.pop %v245
  %v262 = verf.f32.pop %v246
  %v263 = vadd.f32 %v247, 1.0
  %v264 = vadd.f32 %v248, 1.0
  %v265 = vadd.f32 %v249, 1.0
  %v266 = vadd.f32 %v250, 1.0
  %v267 = vadd.f32 %v251, 1.0
  %v268 = vadd.f32 %v252, 1.0
  %v269 = vadd.f32 %v253, 1.0
  %v270 = vadd.f32 %v254, 1.0
  %v271 = vadd.f32 %v255, 1.0
  %v272 = vadd.f32 %v256, 1.0
  %v273 = vadd.f32 %v257, 1.0
  %v274 = vadd.f32 %v258, 1.0
  %v275 = vadd.f32 %v259, 1.0
  %v276 = vadd.f32 %v260, 1.0
  %v277 = vadd.f32 %v261, 1.0
  %v278 = vadd.f32 %v262, 1.0
  %v279 = vmul.f32 %v215, %v263
  %v280 = vmul.f32 %v216, %v264
  %v281 = vmul.f32 %v217, %v265
  %v282 = vmul.f32 %v218, %v266
  %v283 = vmul.f32 %v219, %v267
  %v284 = vmul.f32 %v220, %v268
  %v285 = vmul.f32 %v221, %v269
  %v286 = vmul.f32 %v222, %v270
  %v287 = vmul.f32 %v223, %v271
  %v288 = vmul.f32 %v224, %v272
  %v289 = vmul.f32 %v225, %v273
  %v290 = vmul.f32 %v226, %v274
  %v291 = vmul.f32 %v227, %v275
  %v292 = vmul.f32 %v228, %v276
  %v293 = vmul.f32 %v229, %v277
  %v294 = vmul.f32 %v230, %v278
  %295 = vadd.xlane.f32.xlu0 %v279
  %v296 = vpop.xlane.xlu0 %295
  %297 = vadd.xlane.f32.xlu0 %v280
  %v298 = vpop.xlane.xlu0 %297
  %299 = vadd.xlane.f32.xlu0 %v281
  %v300 = vpop.xlane.xlu0 %299
  %301 = vadd.xlane.f32.xlu0 %v282
  %v302 = vpop.xlane.xlu0 %301
  %303 = vadd.xlane.f32.xlu0 %v283
  %v304 = vpop.xlane.xlu0 %303
  %305 = vadd.xlane.f32.xlu0 %v284
  %v306 = vpop.xlane.xlu0 %305
  %307 = vadd.xlane.f32.xlu0 %v285
  %v308 = vpop.xlane.xlu0 %307
  %309 = vadd.xlane.f32.xlu0 %v286
  %v310 = vpop.xlane.xlu0 %309
  %311 = vadd.xlane.f32.xlu0 %v287
  %v312 = vpop.xlane.xlu0 %311
  %313 = vadd.xlane.f32.xlu0 %v288
  %v314 = vpop.xlane.xlu0 %313
  %315 = vadd.xlane.f32.xlu0 %v289
  %v316 = vpop.xlane.xlu0 %315
  %317 = vadd.xlane.f32.xlu0 %v290
  %v318 = vpop.xlane.xlu0 %317
  %319 = vadd.xlane.f32.xlu0 %v291
  %v320 = vpop.xlane.xlu0 %319
  %321 = vadd.xlane.f32.xlu0 %v292
  %v322 = vpop.xlane.xlu0 %321
  %323 = vadd.xlane.f32.xlu0 %v293
  %v324 = vpop.xlane.xlu0 %323
  %325 = vadd.xlane.f32.xlu0 %v294
  %v326 = vpop.xlane.xlu0 %325
  %v327 = vmul.f32 %v296, 0.03125
  %v328 = vmul.f32 %v298, 0.03125
  %v329 = vmul.f32 %v300, 0.03125
  %v330 = vmul.f32 %v302, 0.03125
  %v331 = vmul.f32 %v304, 0.03125
  %v332 = vmul.f32 %v306, 0.03125
  %v333 = vmul.f32 %v308, 0.03125
  %v334 = vmul.f32 %v310, 0.03125
  %v335 = vmul.f32 %v312, 0.03125
  %v336 = vmul.f32 %v314, 0.03125
  %v337 = vmul.f32 %v316, 0.03125
  %v338 = vmul.f32 %v318, 0.03125
  %v339 = vmul.f32 %v320, 0.03125
  %v340 = vmul.f32 %v322, 0.03125
  %v341 = vmul.f32 %v324, 0.03125
  %v342 = vmul.f32 %v326, 0.03125
  %v343 = vsub.f32 %v279, %v327
  %v344 = vsub.f32 %v280, %v328
  %v345 = vsub.f32 %v281, %v329
  %v346 = vsub.f32 %v282, %v330
  %v347 = vsub.f32 %v283, %v331
  %v348 = vsub.f32 %v284, %v332
  %v349 = vsub.f32 %v285, %v333
  %v350 = vsub.f32 %v286, %v334
  %v351 = vsub.f32 %v287, %v335
  %v352 = vsub.f32 %v288, %v336
  %v353 = vsub.f32 %v289, %v337
  %v354 = vsub.f32 %v290, %v338
  %v355 = vsub.f32 %v291, %v339
  %v356 = vsub.f32 %v292, %v340
  %v357 = vsub.f32 %v293, %v341
  %v358 = vsub.f32 %v294, %v342
  %v359 = vlaneseq
  %v360 = vand.u32 %v359, 127
  %vm361 = vcmp.lt.s32.totalorder %v360, 32
  %v362 = vsel %vm361, 1, 0
  %vm363 = vcmp.eq.s32.totalorder %v362, 1
  %v364 = vsel %vm363, %v343, 0.0
  %v365 = vsel %vm363, %v344, 0.0
  %v366 = vsel %vm363, %v345, 0.0
  %v367 = vsel %vm363, %v346, 0.0
  %v368 = vsel %vm363, %v347, 0.0
  %v369 = vsel %vm363, %v348, 0.0
  %v370 = vsel %vm363, %v349, 0.0
  %v371 = vsel %vm363, %v350, 0.0
  %v372 = vsel %vm363, %v351, 0.0
  %v373 = vsel %vm363, %v352, 0.0
  %v374 = vsel %vm363, %v353, 0.0
  %v375 = vsel %vm363, %v354, 0.0
  %v376 = vsel %vm363, %v355, 0.0
  %v377 = vsel %vm363, %v356, 0.0
  %v378 = vsel %vm363, %v357, 0.0
  %v379 = vsel %vm363, %v358, 0.0
  %v380 = vmul.f32 %v364, %v364
  %v381 = vmul.f32 %v365, %v365
  %v382 = vmul.f32 %v366, %v366
  %v383 = vmul.f32 %v367, %v367
  %v384 = vmul.f32 %v368, %v368
  %v385 = vmul.f32 %v369, %v369
  %v386 = vmul.f32 %v370, %v370
  %v387 = vmul.f32 %v371, %v371
  %v388 = vmul.f32 %v372, %v372
  %v389 = vmul.f32 %v373, %v373
  %v390 = vmul.f32 %v374, %v374
  %v391 = vmul.f32 %v375, %v375
  %v392 = vmul.f32 %v376, %v376
  %v393 = vmul.f32 %v377, %v377
  %v394 = vmul.f32 %v378, %v378
  %v395 = vmul.f32 %v379, %v379
  %396 = vadd.xlane.f32.xlu0 %v380
  %v397 = vpop.xlane.xlu0 %396
  %398 = vadd.xlane.f32.xlu0 %v381
  %v399 = vpop.xlane.xlu0 %398
  %400 = vadd.xlane.f32.xlu0 %v382
  %v401 = vpop.xlane.xlu0 %400
  %402 = vadd.xlane.f32.xlu0 %v383
  %v403 = vpop.xlane.xlu0 %402
  %404 = vadd.xlane.f32.xlu0 %v384
  %v405 = vpop.xlane.xlu0 %404
  %406 = vadd.xlane.f32.xlu0 %v385
  %v407 = vpop.xlane.xlu0 %406
  %408 = vadd.xlane.f32.xlu0 %v386
  %v409 = vpop.xlane.xlu0 %408
  %410 = vadd.xlane.f32.xlu0 %v387
  %v411 = vpop.xlane.xlu0 %410
  %412 = vadd.xlane.f32.xlu0 %v388
  %v413 = vpop.xlane.xlu0 %412
  %414 = vadd.xlane.f32.xlu0 %v389
  %v415 = vpop.xlane.xlu0 %414
  %416 = vadd.xlane.f32.xlu0 %v390
  %v417 = vpop.xlane.xlu0 %416
  %418 = vadd.xlane.f32.xlu0 %v391
  %v419 = vpop.xlane.xlu0 %418
  %420 = vadd.xlane.f32.xlu0 %v392
  %v421 = vpop.xlane.xlu0 %420
  %422 = vadd.xlane.f32.xlu0 %v393
  %v423 = vpop.xlane.xlu0 %422
  %424 = vadd.xlane.f32.xlu0 %v394
  %v425 = vpop.xlane.xlu0 %424
  %426 = vadd.xlane.f32.xlu0 %v395
  %v427 = vpop.xlane.xlu0 %426
  %v428 = vmul.f32 %v397, 0.03125
  %v429 = vmul.f32 %v399, 0.03125
  %v430 = vmul.f32 %v401, 0.03125
  %v431 = vmul.f32 %v403, 0.03125
  %v432 = vmul.f32 %v405, 0.03125
  %v433 = vmul.f32 %v407, 0.03125
  %v434 = vmul.f32 %v409, 0.03125
  %v435 = vmul.f32 %v411, 0.03125
  %v436 = vmul.f32 %v413, 0.03125
  %v437 = vmul.f32 %v415, 0.03125
  %v438 = vmul.f32 %v417, 0.03125
  %v439 = vmul.f32 %v419, 0.03125
  %v440 = vmul.f32 %v421, 0.03125
  %v441 = vmul.f32 %v423, 0.03125
  %v442 = vmul.f32 %v425, 0.03125
  %v443 = vmul.f32 %v427, 0.03125
  %v444 = vadd.f32 %v428, 1e-06
  %v445 = vadd.f32 %v429, 1e-06
  %v446 = vadd.f32 %v430, 1e-06
  %v447 = vadd.f32 %v431, 1e-06
  %v448 = vadd.f32 %v432, 1e-06
  %v449 = vadd.f32 %v433, 1e-06
  %v450 = vadd.f32 %v434, 1e-06
  %v451 = vadd.f32 %v435, 1e-06
  %v452 = vadd.f32 %v436, 1e-06
  %v453 = vadd.f32 %v437, 1e-06
  %v454 = vadd.f32 %v438, 1e-06
  %v455 = vadd.f32 %v439, 1e-06
  %v456 = vadd.f32 %v440, 1e-06
  %v457 = vadd.f32 %v441, 1e-06
  %v458 = vadd.f32 %v442, 1e-06
  %v459 = vadd.f32 %v443, 1e-06
  %v460 = vrsqrt.pop %v444
  %v461 = vrsqrt.pop %v445
  %v462 = vrsqrt.pop %v446
  %v463 = vrsqrt.pop %v447
  %v464 = vrsqrt.pop %v448
  %v465 = vrsqrt.pop %v449
  %v466 = vrsqrt.pop %v450
  %v467 = vrsqrt.pop %v451
  %v468 = vrsqrt.pop %v452
  %v469 = vrsqrt.pop %v453
  %v470 = vrsqrt.pop %v454
  %v471 = vrsqrt.pop %v455
  %v472 = vrsqrt.pop %v456
  %v473 = vrsqrt.pop %v457
  %v474 = vrsqrt.pop %v458
  %v475 = vrsqrt.pop %v459
  %v476 = vmul.f32 %v364, %v460
  %v477 = vmul.f32 %v365, %v461
  %v478 = vmul.f32 %v366, %v462
  %v479 = vmul.f32 %v367, %v463
  %v480 = vmul.f32 %v368, %v464
  %v481 = vmul.f32 %v369, %v465
  %v482 = vmul.f32 %v370, %v466
  %v483 = vmul.f32 %v371, %v467
  %v484 = vmul.f32 %v372, %v468
  %v485 = vmul.f32 %v373, %v469
  %v486 = vmul.f32 %v374, %v470
  %v487 = vmul.f32 %v375, %v471
  %v488 = vmul.f32 %v376, %v472
  %v489 = vmul.f32 %v377, %v473
  %v490 = vmul.f32 %v378, %v474
  %v491 = vmul.f32 %v379, %v475
  %v493 = vlaneseq
  %v494 = vshrl.u32 %v493, 7
  %v495 = vsub.s32 0, %v494
  %v496 = vrot.slane %v62, %v495
  %v498 = vmul.f32 %v476, %v496
  %v499 = vmul.f32 %v477, %v496
  %v500 = vmul.f32 %v478, %v496
  %v501 = vmul.f32 %v479, %v496
  %v502 = vmul.f32 %v480, %v496
  %v503 = vmul.f32 %v481, %v496
  %v504 = vmul.f32 %v482, %v496
  %v505 = vmul.f32 %v483, %v496
  %v506 = vmul.f32 %v484, %v496
  %v507 = vmul.f32 %v485, %v496
  %v508 = vmul.f32 %v486, %v496
  %v509 = vmul.f32 %v487, %v496
  %v510 = vmul.f32 %v488, %v496
  %v511 = vmul.f32 %v489, %v496
  %v512 = vmul.f32 %v490, %v496
  %v513 = vmul.f32 %v491, %v496
  %v515 = vlaneseq
  %v516 = vshrl.u32 %v515, 7
  %v517 = vsub.s32 0, %v516
  %v518 = vrot.slane %v63, %v517
  %v520 = vadd.f32 %v498, %v518
  %v521 = vadd.f32 %v499, %v518
  %v522 = vadd.f32 %v500, %v518
  %v523 = vadd.f32 %v501, %v518
  %v524 = vadd.f32 %v502, %v518
  %v525 = vadd.f32 %v503, %v518
  %v526 = vadd.f32 %v504, %v518
  %v527 = vadd.f32 %v505, %v518
  %v528 = vadd.f32 %v506, %v518
  %v529 = vadd.f32 %v507, %v518
  %v530 = vadd.f32 %v508, %v518
  %v531 = vadd.f32 %v509, %v518
  %v532 = vadd.f32 %v510, %v518
  %v533 = vadd.f32 %v511, %v518
  %v534 = vadd.f32 %v512, %v518
  %v535 = vadd.f32 %v513, %v518
  %536 = vst [vmem:[%s5] sm:$0xff] %v520
  %537 = vst [vmem:[%s5 + $0x8] sm:$0xff] %v521
  %538 = vst [vmem:[%s5 + $0x10] sm:$0xff] %v522
  %539 = vst [vmem:[%s5 + $0x18] sm:$0xff] %v523
  %540 = vst [vmem:[%s5 + $0x20] sm:$0xff] %v524
  %541 = vst [vmem:[%s5 + $0x28] sm:$0xff] %v525
  %542 = vst [vmem:[%s5 + $0x30] sm:$0xff] %v526
  %543 = vst [vmem:[%s5 + $0x38] sm:$0xff] %v527
  %544 = vst [vmem:[%s5 + $0x40] sm:$0xff] %v528
  %545 = vst [vmem:[%s5 + $0x48] sm:$0xff] %v529
  %546 = vst [vmem:[%s5 + $0x50] sm:$0xff] %v530
  %547 = vst [vmem:[%s5 + $0x58] sm:$0xff] %v531
  %548 = vst [vmem:[%s5 + $0x60] sm:$0xff] %v532
  %549 = vst [vmem:[%s5 + $0x68] sm:$0xff] %v533
  %550 = vst [vmem:[%s5 + $0x70] sm:$0xff] %v534
  %551 = vst [vmem:[%s5 + $0x78] sm:$0xff] %v535
  // Predicated region
  $region22: #{_mlp_forward_impl.1} parent=0 // pred_check
    _
  $region23: #{_mlp_forward_impl.1} parent=0 // pred_check_branch
    %553 = sbr.rel (0) target = $region25
  $region24: #{_mlp_forward_impl.1} parent=0 // pred_region
    _
  $region25: #{_mlp_forward_impl.1} parent=0 // pred_fallthru
    _
  // Predicated region
  $region26: #{_mlp_forward_impl.1} parent=0 // pred_check
    _
  $region27: #{_mlp_forward_impl.1} parent=0 // pred_check_branch
    %555 = sbr.rel (0) target = $region29
  $region28: #{_mlp_forward_impl.1} parent=0 // pred_region
    _
  $region29: #{_mlp_forward_impl.1} parent=0 // pred_fallthru
    _

</llo_original>
